<compile_context>
chip_gen: v7x
topology: tpu7x:2x2x1
jax: 0.10.0
libtpu: 0.0.40
codegen_flags: <defaults>
</compile_context>

<pallas_src>
import functools

import jax
import jax.numpy as jnp
from jax import lax
from jax.experimental import pallas as pl
from jax.experimental.pallas import tpu as pltpu

DROP_P = 0.2
BN_EPS = 1e-5


def _round_up(v, m):
    return ((v + m - 1) // m) * m


def _dense_block_kernel(seed_ref, x_ref, w_ref, gamma_ref, beta_ref, o_ref,
                        acc_ref, *, use_hw_prng):
    j = pl.program_id(0)                       # feature (out_dim) tile index
    k = pl.program_id(1)                       # reduction (in_dim) tile index
    nk = pl.num_programs(1)

    @pl.when(k == 0)
    def _():
        acc_ref[...] = jnp.zeros_like(acc_ref)

    # ---- Linear (bias omitted: cancels exactly under training-mode BatchNorm).
    # bf16 operands on the MXU, f32 accumulation in VMEM scratch.
    acc_ref[...] += lax.dot_general(
        x_ref[...], w_ref[...],
        (((1,), (1,)), ((), ())),              # contract in_dim of both (no transpose)
        preferred_element_type=jnp.float32)

    @pl.when(k == nk - 1)
    def _():
        y = acc_ref[...]                       # (N, TN) f32
        nr, tn = y.shape

        # ---- BatchNorm1d (training mode): pivoted one-pass sum / sum-of-squares.
        # Subtracting a per-feature pivot (row 0) keeps the one-pass variance
        # numerically safe (shift-invariant) at the cost of a single subtract.
        pivot = y[0:1, :]
        d = y - pivot
        n = jnp.float32(nr)
        s = jnp.sum(d, axis=0, keepdims=True)
        ss = jnp.sum(d * d, axis=0, keepdims=True)
        mean_d = s / n
        var = jnp.maximum(ss / n - mean_d * mean_d, 0.0)   # biased batch variance
        inv = lax.rsqrt(var + BN_EPS)
        # gamma/beta arrive pre-scaled by 1/(1-p) from the wrapper.
        y = (d - mean_d) * inv * gamma_ref[...] + beta_ref[...]

        # ---- ReLU
        y = jnp.maximum(y, 0.0)

        # ---- Dropout (inverted; 1/(1-p) already folded into gamma/beta).
        thresh = jnp.int32(int(DROP_P * (1 << 23)))
        if use_hw_prng:
            # Hardware PRNG, seeded per feature tile: bits come off the VALU hot path.
            pltpu.prng_seed(seed_ref[0] + j)
            bits = pltpu.prng_random_bits((nr, tn))
            if bits.dtype != jnp.int32:
                bits = pltpu.bitcast(bits, jnp.int32)
        else:
            # Portable stateless hash fallback: 1-D row/col terms hoisted, only one
            # full-size int32 multiply, integer-domain threshold.
            row = lax.broadcasted_iota(jnp.int32, (nr, 1), 0)
            col = lax.broadcasted_iota(jnp.int32, (1, tn), 1) + j * tn
            rh = row * jnp.int32(65599) + seed_ref[0] * jnp.int32(40503)
            rh = rh * jnp.int32(1103515245)
            rh = rh ^ ((rh >> 13) & jnp.int32(0x0007FFFF))
            ch = col * jnp.int32(747796405)
            h = rh + ch                                   # broadcast to (nr, tn)
            h = h ^ ((h >> 15) & jnp.int32(0x0001FFFF))
            h = h * jnp.int32(1103515245)
            h = h ^ ((h >> 16) & jnp.int32(0x0000FFFF))
            bits = h
        keep = (bits & jnp.int32(0x007FFFFF)) >= thresh    # keep with prob 1-p
        y = jnp.where(keep, y, 0.0)

        o_ref[...] = y.astype(o_ref.dtype)


def dense_block(x, w, b, gamma, beta, seed, *, tile_n=256, tile_k=512,
                use_hw_prng=True, mxu_dtype=jnp.bfloat16):
    """x: (N, in_dim); w: (out_dim, in_dim); b/gamma/beta: (out_dim,).

    tile_n: output-feature tile width (v5e: 128, v6e: 512, v7x: 256 recommended).
    tile_k: in_dim tile (multiple of 128) used only when in_dim > tile_k.
    """
    del b  # bias is a mathematical no-op under training-mode BatchNorm
    n, in_dim = x.shape
    out_dim = w.shape[0]

    # Lane-dense output tiling (multiple of 128, no wider than needed).
    tn = max(128, min(_round_up(tile_n, 128), _round_up(out_dim, 128)))
    out_pad = _round_up(out_dim, tn)

    # Reduction (in_dim) tiling: single tile when it already fits.
    if in_dim <= tile_k:
        tk, in_pad = in_dim, in_dim
    else:
        assert tile_k % 128 == 0, "tile_k must be a multiple of 128"
        tk, in_pad = tile_k, _round_up(in_dim, tile_k)

    scale = jnp.float32(1.0 / (1.0 - DROP_P))              # folded dropout scale
    g2 = (gamma.astype(jnp.float32) * scale).reshape(1, out_dim)
    be2 = (beta.astype(jnp.float32) * scale).reshape(1, out_dim)

    x_p = x.astype(mxu_dtype)                              # bf16 MXU operands
    w_p = w.astype(mxu_dtype)
    if in_pad != in_dim:                                   # zero K-padding: exact
        x_p = jnp.pad(x_p, ((0, 0), (0, in_pad - in_dim)))
        w_p = jnp.pad(w_p, ((0, 0), (0, in_pad - in_dim)))
    if out_pad != out_dim:                                 # zero feature padding
        w_p = jnp.pad(w_p, ((0, out_pad - out_dim), (0, 0)))
        g2 = jnp.pad(g2, ((0, 0), (0, out_pad - out_dim)))
        be2 = jnp.pad(be2, ((0, 0), (0, out_pad - out_dim)))

    seed_arr = jnp.asarray([seed], dtype=jnp.int32)
    grid = (out_pad // tn, in_pad // tk)

    # Explicit VMEM budget: double-buffered streamed tiles + f32 accumulator.
    # (If this approaches ~56 MiB, shrink tile_n / batch: v7x has 64 MiB per TC.)
    bytes_in = jnp.ones((), mxu_dtype).dtype.itemsize
    est = (2 * n * tk * bytes_in            # x blocks (double-buffered)
           + 2 * tn * tk * bytes_in         # W blocks
           + 2 * 2 * tn * 4                 # gamma/beta blocks
           + 2 * n * tn * 4                 # output blocks
           + n * tn * 4)                    # f32 accumulator scratch
    vmem_limit = int(max(8 << 20, min(56 << 20, 2 * est + (4 << 20))))

    def _run(hw_prng):
        kern = functools.partial(_dense_block_kernel, use_hw_prng=hw_prng)
        return pl.pallas_call(
            kern,
            out_shape=jax.ShapeDtypeStruct((n, out_pad), jnp.float32),
            grid_spec=pltpu.PrefetchScalarGridSpec(
                num_scalar_prefetch=1,                      # seed -> SMEM
                grid=grid,
                in_specs=[
                    pl.BlockSpec((n, tk), lambda j, k, s: (0, k)),    # x: K-streamed
                    pl.BlockSpec((tn, tk), lambda j, k, s: (j, k)),   # W tile
                    pl.BlockSpec((1, tn), lambda j, k, s: (0, j)),    # gamma'
                    pl.BlockSpec((1, tn), lambda j, k, s: (0, j)),    # beta'
                ],
                out_specs=pl.BlockSpec((n, tn), lambda j, k, s: (0, j)),
                scratch_shapes=[pltpu.VMEM((n, tn), jnp.float32)],    # f32 accumulator
            ),
            compiler_params=pltpu.CompilerParams(
                dimension_semantics=("parallel", "arbitrary"),
                vmem_limit_bytes=vmem_limit),
        )(seed_arr, x_p, w_p, g2, be2)

    if use_hw_prng:
        try:
            out = _run(True)
        except Exception:            # fall back to portable hash if PRNG won't lower
            out = _run(False)
    else:
        out = _run(False)

    return out[:, :out_dim]


if __name__ == "__main__":
    # Small shapes consistent with DenseBlock(in_dim=32, out_dim=64).
    N, IN_DIM, OUT_DIM = 8, 32, 64

    key = jax.random.PRNGKey(0)
    kx, kw, kb = jax.random.split(key, 3)

    x = jax.random.normal(kx, (N, IN_DIM), dtype=jnp.float32)
    bound = 1.0 / (IN_DIM ** 0.5)
    w = jax.random.uniform(kw, (OUT_DIM, IN_DIM), minval=-bound, maxval=bound,
                           dtype=jnp.float32)
    b = jax.random.uniform(kb, (OUT_DIM,), minval=-bound, maxval=bound,
                           dtype=jnp.float32)
    gamma = jnp.ones((OUT_DIM,), dtype=jnp.float32)    # BatchNorm1d weight init
    beta = jnp.zeros((OUT_DIM,), dtype=jnp.float32)    # BatchNorm1d bias init

    out = dense_block(x, w, b, gamma, beta, seed=0)
    out = jax.block_until_ready(out)

    assert out.shape == (N, OUT_DIM)
    assert out.dtype == jnp.float32
    assert bool(jnp.all(jnp.isfinite(out)))

    # Reference uses the same bf16 operand rounding the MXU sees; BN/epilogue in f32.
    xb = x.astype(jnp.bfloat16).astype(jnp.float32)
    wb = w.astype(jnp.bfloat16).astype(jnp.float32)
    lin = xb @ wb.T + b
    mu = lin.mean(axis=0, keepdims=True)
    va = ((lin - mu) ** 2).mean(axis=0, keepdims=True)
    ref = jnp.maximum((lin - mu) / jnp.sqrt(va + BN_EPS) * gamma + beta, 0.0)
    ref = ref / (1.0 - DROP_P)

    # Every non-dropped element must match the reference.
    err = jnp.where(out != 0, jnp.abs(out - ref), 0.0)
    assert float(err.max()) < 5e-3, float(err.max())

    # Dropout sanity: among clearly-positive reference positions, the dropped
    # fraction should be in a loose band around p=0.2.
    pos = ref > 1e-6
    n_pos = int(pos.sum())
    if n_pos > 0:
        dropped = jnp.logical_and(pos, out == 0)
        frac = float(dropped.sum()) / n_pos
        assert 0.02 <= frac <= 0.5, frac

    print("KERNEL_OK")
</pallas_src>

<mosaic_0001>
module attributes {stable_mosaic.version = 11 : i64} {
  func.func @_dense_block_kernel(%arg0: i32, %arg1: i32, %arg2: memref<1xi32, #tpu.memory_space<smem>>, %arg3: memref<8x32xbf16, #tpu.memory_space<vmem>>, %arg4: memref<128x32xbf16, #tpu.memory_space<vmem>>, %arg5: memref<1x128xf32, #tpu.memory_space<vmem>>, %arg6: memref<1x128xf32, #tpu.memory_space<vmem>>, %arg7: memref<8x128xf32, #tpu.memory_space<vmem>>, %arg8: memref<8x128xf32, #tpu.memory_space<vmem>>) attributes {dimension_semantics = [#tpu.dimension_semantics<parallel>, #tpu.dimension_semantics<arbitrary>], iteration_bounds = array<i64: 1, 1>, scalar_prefetch = 1 : i64, scratch_operands = 1 : i64, tpu.core_type = #tpu.core_type<tc>, window_params = [{transform_indices = @transform_0, window_bounds = array<i64: 8, 32>}, {transform_indices = @transform_1, window_bounds = array<i64: 128, 32>}, {transform_indices = @transform_2, window_bounds = array<i64: 1, 128>}, {transform_indices = @transform_3, window_bounds = array<i64: 1, 128>}, {transform_indices = @transform_4, window_bounds = array<i64: 8, 128>}]} {
    %c0_i32 = arith.constant 0 : i32
    %0 = arith.cmpi eq, %arg1, %c0_i32 : i32
    %1 = arith.extui %0 : i1 to i32
    %c0_i32_0 = arith.constant 0 : i32
    %2 = arith.cmpi ne, %1, %c0_i32_0 : i32
    scf.if %2 {
      %cst_10 = arith.constant 0.000000e+00 : f32
      %12 = vector.broadcast %cst_10 : f32 to vector<8x128xf32>
      %c0_11 = arith.constant 0 : index
      %c0_12 = arith.constant 0 : index
      %13 = vector.load %arg8[%c0_11, %c0_12] : memref<8x128xf32, #tpu.memory_space<vmem>>, vector<8x128xf32>
      tpu.vector_store %arg8[%c0_11, %c0_12], %12 {strides = array<i32>} : memref<8x128xf32, #tpu.memory_space<vmem>>, vector<8x128xf32>,
    } else {
    }
    %c0 = arith.constant 0 : index
    %c0_1 = arith.constant 0 : index
    %3 = vector.load %arg8[%c0, %c0_1] : memref<8x128xf32, #tpu.memory_space<vmem>>, vector<8x128xf32>
    %c0_2 = arith.constant 0 : index
    %c0_3 = arith.constant 0 : index
    %4 = vector.load %arg3[%c0_2, %c0_3] : memref<8x32xbf16, #tpu.memory_space<vmem>>, vector<8x32xbf16>
    %c0_4 = arith.constant 0 : index
    %c0_5 = arith.constant 0 : index
    %5 = vector.load %arg4[%c0_4, %c0_5] : memref<128x32xbf16, #tpu.memory_space<vmem>>, vector<128x32xbf16>
    %cst = arith.constant dense<0.000000e+00> : vector<8x128xf32>
    %6 = tpu.matmul %4, %5, %cst {dimension_numbers = #tpu.dot_dimension_numbers<[1], [1], [0], [0], [0, 0, 1, 0], [], []>} : vector<8x32xbf16>, vector<128x32xbf16>, vector<8x128xf32> -> vector<8x128xf32>
    %7 = arith.addf %3, %6 : vector<8x128xf32>
    %c0_6 = arith.constant 0 : index
    %c0_7 = arith.constant 0 : index
    %8 = vector.load %arg8[%c0_6, %c0_7] : memref<8x128xf32, #tpu.memory_space<vmem>>, vector<8x128xf32>
    tpu.vector_store %arg8[%c0_6, %c0_7], %7 {strides = array<i32>} : memref<8x128xf32, #tpu.memory_space<vmem>>, vector<8x128xf32>,
    %c0_i32_8 = arith.constant 0 : i32
    %9 = arith.cmpi eq, %arg1, %c0_i32_8 : i32
    %10 = arith.extui %9 : i1 to i32
    %c0_i32_9 = arith.constant 0 : i32
    %11 = arith.cmpi ne, %10, %c0_i32_9 : i32
    scf.if %11 {
      %c0_10 = arith.constant 0 : index
      %c0_11 = arith.constant 0 : index
      %12 = vector.load %arg8[%c0_10, %c0_11] : memref<8x128xf32, #tpu.memory_space<vmem>>, vector<8x128xf32>
      %13 = vector.extract_strided_slice %12 {offsets = [0, 0], sizes = [1, 128], strides = [1, 1]} : vector<8x128xf32> to vector<1x128xf32>
      %14 = vector.broadcast %13 : vector<1x128xf32> to vector<8x128xf32>
      %15 = arith.subf %12, %14 : vector<8x128xf32>
      %cst_12 = arith.constant dense<0.000000e+00> : vector<128xf32>
      %16 = vector.multi_reduction <add>, %15, %cst_12 [0] : vector<8x128xf32> to vector<128xf32>
      %17 = vector.shape_cast %16 : vector<128xf32> to vector<1x128xf32>
      %18 = arith.mulf %15, %15 : vector<8x128xf32>
      %cst_13 = arith.constant dense<0.000000e+00> : vector<128xf32>
      %19 = vector.multi_reduction <add>, %18, %cst_13 [0] : vector<8x128xf32> to vector<128xf32>
      %20 = vector.shape_cast %19 : vector<128xf32> to vector<1x128xf32>
      %cst_14 = arith.constant 8.000000e+00 : f32
      %21 = vector.broadcast %cst_14 : f32 to vector<1x128xf32>
      %22 = arith.divf %17, %21 : vector<1x128xf32>
      %cst_15 = arith.constant 8.000000e+00 : f32
      %23 = vector.broadcast %cst_15 : f32 to vector<1x128xf32>
      %24 = arith.divf %20, %23 : vector<1x128xf32>
      %25 = arith.mulf %22, %22 : vector<1x128xf32>
      %26 = arith.subf %24, %25 : vector<1x128xf32>
      %cst_16 = arith.constant 0.000000e+00 : f32
      %27 = vector.broadcast %cst_16 : f32 to vector<1x128xf32>
      %28 = arith.maximumf %26, %27 : vector<1x128xf32>
      %cst_17 = arith.constant 9.99999974E-6 : f32
      %29 = vector.broadcast %cst_17 : f32 to vector<1x128xf32>
      %30 = arith.addf %28, %29 : vector<1x128xf32>
      %31 = math.rsqrt %30 : vector<1x128xf32>
      %32 = vector.broadcast %22 : vector<1x128xf32> to vector<8x128xf32>
      %33 = arith.subf %15, %32 : vector<8x128xf32>
      %34 = vector.broadcast %31 : vector<1x128xf32> to vector<8x128xf32>
      %35 = arith.mulf %33, %34 : vector<8x128xf32>
      %c0_18 = arith.constant 0 : index
      %c0_19 = arith.constant 0 : index
      %36 = vector.load %arg5[%c0_18, %c0_19] : memref<1x128xf32, #tpu.memory_space<vmem>>, vector<1x128xf32>
      %37 = vector.broadcast %36 : vector<1x128xf32> to vector<8x128xf32>
      %38 = arith.mulf %35, %37 : vector<8x128xf32>
      %c0_20 = arith.constant 0 : index
      %c0_21 = arith.constant 0 : index
      %39 = vector.load %arg6[%c0_20, %c0_21] : memref<1x128xf32, #tpu.memory_space<vmem>>, vector<1x128xf32>
      %40 = vector.broadcast %39 : vector<1x128xf32> to vector<8x128xf32>
      %41 = arith.addf %38, %40 : vector<8x128xf32>
      %cst_22 = arith.constant 0.000000e+00 : f32
      %42 = vector.broadcast %cst_22 : f32 to vector<8x128xf32>
      %43 = arith.maximumf %41, %42 : vector<8x128xf32>
      %c0_23 = arith.constant 0 : index
      %44 = memref.load %arg2[%c0_23] : memref<1xi32, #tpu.memory_space<smem>>
      %45 = arith.addi %44, %arg0 : i32
      "tpu.prng_set_seed_32"(%45) : (i32) -> ()
      %46 = "tpu.prng_random_bits"() : () -> vector<8x128xi32>
      %c8388607_i32 = arith.constant 8388607 : i32
      %47 = vector.broadcast %c8388607_i32 : i32 to vector<8x128xi32>
      %48 = arith.andi %46, %47 : vector<8x128xi32>
      %c1677721_i32 = arith.constant 1677721 : i32
      %49 = vector.broadcast %c1677721_i32 : i32 to vector<8x128xi32>
      %50 = arith.cmpi sge, %48, %49 : vector<8x128xi32>
      %cst_24 = arith.constant 0.000000e+00 : f32
      %51 = vector.broadcast %cst_24 : f32 to vector<8x128xf32>
      %52 = arith.select %50, %43, %51 : vector<8x128xi1>, vector<8x128xf32>
      %c0_25 = arith.constant 0 : index
      %c0_26 = arith.constant 0 : index
      %53 = vector.load %arg7[%c0_25, %c0_26] : memref<8x128xf32, #tpu.memory_space<vmem>>, vector<8x128xf32>
      tpu.vector_store %arg7[%c0_25, %c0_26], %52 {strides = array<i32>} : memref<8x128xf32, #tpu.memory_space<vmem>>, vector<8x128xf32>,
    } else {
    }
    return
  }
  func.func @transform_0(%arg0: i32, %arg1: i32, %arg2: memref<1xi32, #tpu.memory_space<smem>>) -> (i32, i32) {
    %c0_i32 = arith.constant 0 : i32
    %c0_i32_0 = arith.constant 0 : i32
    return %c0_i32, %arg1 : i32, i32
  }
  func.func @transform_1(%arg0: i32, %arg1: i32, %arg2: memref<1xi32, #tpu.memory_space<smem>>) -> (i32, i32) {
    %c0_i32 = arith.constant 0 : i32
    return %arg0, %arg1 : i32, i32
  }
  func.func @transform_2(%arg0: i32, %arg1: i32, %arg2: memref<1xi32, #tpu.memory_space<smem>>) -> (i32, i32) {
    %c0_i32 = arith.constant 0 : i32
    %c0_i32_0 = arith.constant 0 : i32
    return %c0_i32, %arg0 : i32, i32
  }
  func.func @transform_3(%arg0: i32, %arg1: i32, %arg2: memref<1xi32, #tpu.memory_space<smem>>) -> (i32, i32) {
    %c0_i32 = arith.constant 0 : i32
    %c0_i32_0 = arith.constant 0 : i32
    return %c0_i32, %arg0 : i32, i32
  }
  func.func @transform_4(%arg0: i32, %arg1: i32, %arg2: memref<1xi32, #tpu.memory_space<smem>>) -> (i32, i32) {
    %c0_i32 = arith.constant 0 : i32
    %c0_i32_0 = arith.constant 0 : i32
    return %c0_i32, %arg0 : i32, i32
  }
}

module attributes {stable_mosaic.version = 11 : i64} {
  func.func @_dense_block_kernel(%arg0: i32, %arg1: i32, %arg2: memref<1xi32, #tpu.memory_space<smem>>, %arg3: memref<8x32xbf16, #tpu.memory_space<vmem>>, %arg4: memref<128x32xbf16, #tpu.memory_space<vmem>>, %arg5: memref<1x128xf32, #tpu.memory_space<vmem>>, %arg6: memref<1x128xf32, #tpu.memory_space<vmem>>, %arg7: memref<8x128xf32, #tpu.memory_space<vmem>>, %arg8: memref<8x128xf32, #tpu.memory_space<vmem>>) attributes {dimension_semantics = [#tpu.dimension_semantics<parallel>, #tpu.dimension_semantics<arbitrary>], iteration_bounds = array<i64: 1, 1>, scalar_prefetch = 1 : i64, scratch_operands = 1 : i64, tpu.core_type = #tpu.core_type<tc>, window_params = [{transform_indices = @transform_0, window_bounds = array<i64: 8, 32>}, {transform_indices = @transform_1, window_bounds = array<i64: 128, 32>}, {transform_indices = @transform_2, window_bounds = array<i64: 1, 128>}, {transform_indices = @transform_3, window_bounds = array<i64: 1, 128>}, {transform_indices = @transform_4, window_bounds = array<i64: 8, 128>}]} {
    %c0_i32 = arith.constant 0 : i32
    %0 = arith.cmpi eq, %arg1, %c0_i32 : i32
    %1 = arith.extui %0 : i1 to i32
    %c0_i32_0 = arith.constant 0 : i32
    %2 = arith.cmpi ne, %1, %c0_i32_0 : i32
    scf.if %2 {
      %cst_10 = arith.constant 0.000000e+00 : f32
      %12 = vector.broadcast %cst_10 : f32 to vector<8x128xf32>
      %c0_11 = arith.constant 0 : index
      %c0_12 = arith.constant 0 : index
      %13 = vector.load %arg8[%c0_11, %c0_12] : memref<8x128xf32, #tpu.memory_space<vmem>>, vector<8x128xf32>
      tpu.vector_store %arg8[%c0_11, %c0_12], %12 {strides = array<i32>} : memref<8x128xf32, #tpu.memory_space<vmem>>, vector<8x128xf32>,
    } else {
    }
    %c0 = arith.constant 0 : index
    %c0_1 = arith.constant 0 : index
    %3 = vector.load %arg8[%c0, %c0_1] : memref<8x128xf32, #tpu.memory_space<vmem>>, vector<8x128xf32>
    %c0_2 = arith.constant 0 : index
    %c0_3 = arith.constant 0 : index
    %4 = vector.load %arg3[%c0_2, %c0_3] : memref<8x32xbf16, #tpu.memory_space<vmem>>, vector<8x32xbf16>
    %c0_4 = arith.constant 0 : index
    %c0_5 = arith.constant 0 : index
    %5 = vector.load %arg4[%c0_4, %c0_5] : memref<128x32xbf16, #tpu.memory_space<vmem>>, vector<128x32xbf16>
    %cst = arith.constant dense<0.000000e+00> : vector<8x128xf32>
    %6 = tpu.matmul %4, %5, %cst {dimension_numbers = #tpu.dot_dimension_numbers<[1], [1], [0], [0], [0, 0, 1, 0], [], []>} : vector<8x32xbf16>, vector<128x32xbf16>, vector<8x128xf32> -> vector<8x128xf32>
    %7 = arith.addf %3, %6 : vector<8x128xf32>
    %c0_6 = arith.constant 0 : index
    %c0_7 = arith.constant 0 : index
    %8 = vector.load %arg8[%c0_6, %c0_7] : memref<8x128xf32, #tpu.memory_space<vmem>>, vector<8x128xf32>
    tpu.vector_store %arg8[%c0_6, %c0_7], %7 {strides = array<i32>} : memref<8x128xf32, #tpu.memory_space<vmem>>, vector<8x128xf32>,
    %c0_i32_8 = arith.constant 0 : i32
    %9 = arith.cmpi eq, %arg1, %c0_i32_8 : i32
    %10 = arith.extui %9 : i1 to i32
    %c0_i32_9 = arith.constant 0 : i32
    %11 = arith.cmpi ne, %10, %c0_i32_9 : i32
    scf.if %11 {
      %c0_10 = arith.constant 0 : index
      %c0_11 = arith.constant 0 : index
      %12 = vector.load %arg8[%c0_10, %c0_11] : memref<8x128xf32, #tpu.memory_space<vmem>>, vector<8x128xf32>
      %13 = vector.extract_strided_slice %12 {offsets = [0, 0], sizes = [1, 128], strides = [1, 1]} : vector<8x128xf32> to vector<1x128xf32>
      %14 = vector.broadcast %13 : vector<1x128xf32> to vector<8x128xf32>
      %15 = arith.subf %12, %14 : vector<8x128xf32>
      %cst_12 = arith.constant dense<0.000000e+00> : vector<128xf32>
      %16 = vector.multi_reduction <add>, %15, %cst_12 [0] : vector<8x128xf32> to vector<128xf32>
      %17 = vector.shape_cast %16 : vector<128xf32> to vector<1x128xf32>
      %18 = arith.mulf %15, %15 : vector<8x128xf32>
      %cst_13 = arith.constant dense<0.000000e+00> : vector<128xf32>
      %19 = vector.multi_reduction <add>, %18, %cst_13 [0] : vector<8x128xf32> to vector<128xf32>
      %20 = vector.shape_cast %19 : vector<128xf32> to vector<1x128xf32>
      %cst_14 = arith.constant 8.000000e+00 : f32
      %21 = vector.broadcast %cst_14 : f32 to vector<1x128xf32>
      %22 = arith.divf %17, %21 : vector<1x128xf32>
      %cst_15 = arith.constant 8.000000e+00 : f32
      %23 = vector.broadcast %cst_15 : f32 to vector<1x128xf32>
      %24 = arith.divf %20, %23 : vector<1x128xf32>
      %25 = arith.mulf %22, %22 : vector<1x128xf32>
      %26 = arith.subf %24, %25 : vector<1x128xf32>
      %cst_16 = arith.constant 0.000000e+00 : f32
      %27 = vector.broadcast %cst_16 : f32 to vector<1x128xf32>
      %28 = arith.maximumf %26, %27 : vector<1x128xf32>
      %cst_17 = arith.constant 9.99999974E-6 : f32
      %29 = vector.broadcast %cst_17 : f32 to vector<1x128xf32>
      %30 = arith.addf %28, %29 : vector<1x128xf32>
      %31 = math.rsqrt %30 : vector<1x128xf32>
      %32 = vector.broadcast %22 : vector<1x128xf32> to vector<8x128xf32>
      %33 = arith.subf %15, %32 : vector<8x128xf32>
      %34 = vector.broadcast %31 : vector<1x128xf32> to vector<8x128xf32>
      %35 = arith.mulf %33, %34 : vector<8x128xf32>
      %c0_18 = arith.constant 0 : index
      %c0_19 = arith.constant 0 : index
      %36 = vector.load %arg5[%c0_18, %c0_19] : memref<1x128xf32, #tpu.memory_space<vmem>>, vector<1x128xf32>
      %37 = vector.broadcast %36 : vector<1x128xf32> to vector<8x128xf32>
      %38 = arith.mulf %35, %37 : vector<8x128xf32>
      %c0_20 = arith.constant 0 : index
      %c0_21 = arith.constant 0 : index
      %39 = vector.load %arg6[%c0_20, %c0_21] : memref<1x128xf32, #tpu.memory_space<vmem>>, vector<1x128xf32>
      %40 = vector.broadcast %39 : vector<1x128xf32> to vector<8x128xf32>
      %41 = arith.addf %38, %40 : vector<8x128xf32>
      %cst_22 = arith.constant 0.000000e+00 : f32
      %42 = vector.broadcast %cst_22 : f32 to vector<8x128xf32>
      %43 = arith.maximumf %41, %42 : vector<8x128xf32>
      %44 = tpu.iota {dimensions = array<i32: 0>} : vector<8x1xi32>
      %45 = tpu.iota {dimensions = array<i32: 1>} : vector<1x128xi32>
      %c128_i32 = arith.constant 128 : i32
      %46 = arith.muli %arg0, %c128_i32 : i32
      %47 = vector.broadcast %46 : i32 to vector<1x128xi32>
      %48 = arith.addi %45, %47 : vector<1x128xi32>
      %c65599_i32 = arith.constant 65599 : i32
      %49 = vector.broadcast %c65599_i32 : i32 to vector<8x1xi32>
      %50 = arith.muli %44, %49 : vector<8x1xi32>
      %c0_23 = arith.constant 0 : index
      %51 = memref.load %arg2[%c0_23] : memref<1xi32, #tpu.memory_space<smem>>
      %c40503_i32 = arith.constant 40503 : i32
      %52 = arith.muli %51, %c40503_i32 : i32
      %53 = vector.broadcast %52 : i32 to vector<8x1xi32>
      %54 = arith.addi %50, %53 : vector<8x1xi32>
      %c1103515245_i32 = arith.constant 1103515245 : i32
      %55 = vector.broadcast %c1103515245_i32 : i32 to vector<8x1xi32>
      %56 = arith.muli %54, %55 : vector<8x1xi32>
      %c13_i32 = arith.constant 13 : i32
      %57 = vector.broadcast %c13_i32 : i32 to vector<8x1xi32>
      %58 = arith.shrsi %56, %57 : vector<8x1xi32>
      %c524287_i32 = arith.constant 524287 : i32
      %59 = vector.broadcast %c524287_i32 : i32 to vector<8x1xi32>
      %60 = arith.andi %58, %59 : vector<8x1xi32>
      %61 = arith.xori %56, %60 : vector<8x1xi32>
      %c747796405_i32 = arith.constant 747796405 : i32
      %62 = vector.broadcast %c747796405_i32 : i32 to vector<1x128xi32>
      %63 = arith.muli %48, %62 : vector<1x128xi32>
      %64 = vector.broadcast %61 : vector<8x1xi32> to vector<8x128xi32>
      %65 = vector.broadcast %63 : vector<1x128xi32> to vector<8x128xi32>
      %66 = arith.addi %64, %65 : vector<8x128xi32>
      %c15_i32 = arith.constant 15 : i32
      %67 = vector.broadcast %c15_i32 : i32 to vector<8x128xi32>
      %68 = arith.shrsi %66, %67 : vector<8x128xi32>
      %c131071_i32 = arith.constant 131071 : i32
      %69 = vector.broadcast %c131071_i32 : i32 to vector<8x128xi32>
      %70 = arith.andi %68, %69 : vector<8x128xi32>
      %71 = arith.xori %66, %70 : vector<8x128xi32>
      %c1103515245_i32_24 = arith.constant 1103515245 : i32
      %72 = vector.broadcast %c1103515245_i32_24 : i32 to vector<8x128xi32>
      %73 = arith.muli %71, %72 : vector<8x128xi32>
      %c16_i32 = arith.constant 16 : i32
      %74 = vector.broadcast %c16_i32 : i32 to vector<8x128xi32>
      %75 = arith.shrsi %73, %74 : vector<8x128xi32>
      %c65535_i32 = arith.constant 65535 : i32
      %76 = vector.broadcast %c65535_i32 : i32 to vector<8x128xi32>
      %77 = arith.andi %75, %76 : vector<8x128xi32>
      %78 = arith.xori %73, %77 : vector<8x128xi32>
      %c8388607_i32 = arith.constant 8388607 : i32
      %79 = vector.broadcast %c8388607_i32 : i32 to vector<8x128xi32>
      %80 = arith.andi %78, %79 : vector<8x128xi32>
      %c1677721_i32 = arith.constant 1677721 : i32
      %81 = vector.broadcast %c1677721_i32 : i32 to vector<8x128xi32>
      %82 = arith.cmpi sge, %80, %81 : vector<8x128xi32>
      %cst_25 = arith.constant 0.000000e+00 : f32
      %83 = vector.broadcast %cst_25 : f32 to vector<8x128xf32>
      %84 = arith.select %82, %43, %83 : vector<8x128xi1>, vector<8x128xf32>
      %c0_26 = arith.constant 0 : index
      %c0_27 = arith.constant 0 : index
      %85 = vector.load %arg7[%c0_26, %c0_27] : memref<8x128xf32, #tpu.memory_space<vmem>>, vector<8x128xf32>
      tpu.vector_store %arg7[%c0_26, %c0_27], %84 {strides = array<i32>} : memref<8x128xf32, #tpu.memory_space<vmem>>, vector<8x128xf32>,
    } else {
    }
    return
  }
  func.func @transform_0(%arg0: i32, %arg1: i32, %arg2: memref<1xi32, #tpu.memory_space<smem>>) -> (i32, i32) {
    %c0_i32 = arith.constant 0 : i32
    %c0_i32_0 = arith.constant 0 : i32
    return %c0_i32, %arg1 : i32, i32
  }
  func.func @transform_1(%arg0: i32, %arg1: i32, %arg2: memref<1xi32, #tpu.memory_space<smem>>) -> (i32, i32) {
    %c0_i32 = arith.constant 0 : i32
    return %arg0, %arg1 : i32, i32
  }
  func.func @transform_2(%arg0: i32, %arg1: i32, %arg2: memref<1xi32, #tpu.memory_space<smem>>) -> (i32, i32) {
    %c0_i32 = arith.constant 0 : i32
    %c0_i32_0 = arith.constant 0 : i32
    return %c0_i32, %arg0 : i32, i32
  }
  func.func @transform_3(%arg0: i32, %arg1: i32, %arg2: memref<1xi32, #tpu.memory_space<smem>>) -> (i32, i32) {
    %c0_i32 = arith.constant 0 : i32
    %c0_i32_0 = arith.constant 0 : i32
    return %c0_i32, %arg0 : i32, i32
  }
  func.func @transform_4(%arg0: i32, %arg1: i32, %arg2: memref<1xi32, #tpu.memory_space<smem>>) -> (i32, i32) {
    %c0_i32 = arith.constant 0 : i32
    %c0_i32_0 = arith.constant 0 : i32
    return %c0_i32, %arg0 : i32, i32
  }
}

</mosaic_0001>

<llo_original>
// kernel: tpu_custom_call.1
$region0: #{tpu_custom_call.1}
  #allocation0 [shape = 'u32[]', space=smem, size = 0x4, offset = 0x4, fixed_abs, tag = 'smem constant byte address 0x4 - core index']
  #allocation1 [shape = 'u32[144,128]{1,0:T(1,128)}', space=vmem, size = 0x12000, scoped, tag = 'internal scratch']
  #allocation2 [shape = 'f32[8,128]{1,0:T(8,128)}', space=vmem, size = 0x1000, scoped, tag = 'scratch operand']
  #allocation3 [shape = 's32[1]{0}', space=sflag, size = 0x4, scoped, tag = 'scoped memory for tpu_custom_call.1']
  #allocation4 [shape = 's32[1]{0:T(128)S(6)}', space=smem, size = 0x200, scoped, tag = 'prefetched SMEM operand 0']
  %s0 = inlined_call_operand.<no memory space> [shape: s32[1], index: 0, kind: input, shape index: {}]
  %s1 = inlined_call_operand.vmem [shape: bf16[8,32], index: 1, kind: input, shape index: {}]
  %s2 = inlined_call_operand.vmem [shape: bf16[128,32], index: 2, kind: input, shape index: {}]
  %s3 = inlined_call_operand.vmem [shape: f32[1,128], index: 3, kind: input, shape index: {}]
  %s4 = inlined_call_operand.vmem [shape: f32[1,128], index: 4, kind: input, shape index: {}]
  %s5 = inlined_call_operand.hbm [shape: f32[8,128], index: 5, kind: output, shape index: {}]
  %s6 = sld [smem:[#allocation0]]
  $region34: #{tpu_custom_call.1} parent=0
    _
  %s8 = ssub.s32 1, %s6
  %s9 = scalar_select 0, %s8, %s6
  %10 = sst [smem:[#allocation4]] %s0
  $region1: #{tpu_custom_call.1} parent=0
    #allocation5 [shape = 'u8[4096]{0}', space=vmem, size = 0x1000, scoped, tag = 'output window, operand 0, single buffered']
    #allocation6 [shape = 's32[1]{0}', space=sflag, size = 0x4, scoped, tag = 'scoped memory for tpu_custom_call.1']
    %11 = vsyncpa [#allocation6], 0
    // Predicated region
    $region2: #{tpu_custom_call.1} parent=1 // pred_check
      _
    $region3: #{tpu_custom_call.1} parent=1 // pred_check_branch
      %13 = sbr.rel (0) target = $region5
    $region4: #{tpu_custom_call.1} parent=1 // pred_region
      _
    $region5: #{tpu_custom_call.1} parent=1 // pred_fallthru
      _
    // Predicated region
    $region6: #{tpu_custom_call.1} parent=1 // pred_check
      _
    $region7: #{tpu_custom_call.1} parent=1 // pred_check_branch
      %15 = sbr.rel (0) target = $region9
    $region8: #{tpu_custom_call.1} parent=1 // pred_region
      _
    $region9: #{tpu_custom_call.1} parent=1 // pred_fallthru
      _
    // Predicated region
    $region10: #{tpu_custom_call.1} parent=1 // pred_check
      _
    $region11: #{tpu_custom_call.1} parent=1 // pred_check_branch
      %17 = sbr.rel (0) target = $region13
    $region12: #{tpu_custom_call.1} parent=1 // pred_region
      _
    $region13: #{tpu_custom_call.1} parent=1 // pred_fallthru
      _
    // Predicated region
    $region14: #{tpu_custom_call.1} parent=1 // pred_check
      _
    $region15: #{tpu_custom_call.1} parent=1 // pred_check_branch
      %19 = sbr.rel (0) target = $region17
    $region16: #{tpu_custom_call.1} parent=1 // pred_region
      _
    $region17: #{tpu_custom_call.1} parent=1 // pred_fallthru
      _
    %p21 = scmp.eq.s32.totalorder 0, 0
    // Predicated region
    $region18: #{tpu_custom_call.1} parent=1 // pred_check
      %p22 = pneg %p21
    $region19: #{tpu_custom_call.1} parent=1 // pred_check_branch
      %24 = sbr.rel (%p22) target = $region21
    $region20: #{tpu_custom_call.1} parent=1 // pred_region
      %25 = vst [vmem:[#allocation2] sm:$0xff] 0.0
    $region21: #{tpu_custom_call.1} parent=1 // pred_fallthru
      _
    %v26 = vld [vmem:[#allocation2] sm:$0xff]
    %v27 = vld [vmem:[%s1] sm:$0xf]
    %v28 = vld [vmem:[%s2] sm:$0xf]
    %v29 = vld [vmem:[%s2 + $0x4] sm:$0xf]
    %v30 = vld [vmem:[%s2 + $0x8] sm:$0xf]
    %v31 = vld [vmem:[%s2 + $0xc] sm:$0xf]
    %v32 = vld [vmem:[%s2 + $0x10] sm:$0xf]
    %v33 = vld [vmem:[%s2 + $0x14] sm:$0xf]
    %v34 = vld [vmem:[%s2 + $0x18] sm:$0xf]
    %v35 = vld [vmem:[%s2 + $0x1c] sm:$0xf]
    %v36 = vld [vmem:[%s2 + $0x20] sm:$0xf]
    %v37 = vld [vmem:[%s2 + $0x24] sm:$0xf]
    %v38 = vld [vmem:[%s2 + $0x28] sm:$0xf]
    %v39 = vld [vmem:[%s2 + $0x2c] sm:$0xf]
    %v40 = vld [vmem:[%s2 + $0x30] sm:$0xf]
    %v41 = vld [vmem:[%s2 + $0x34] sm:$0xf]
    %v42 = vld [vmem:[%s2 + $0x38] sm:$0xf]
    %v43 = vld [vmem:[%s2 + $0x3c] sm:$0xf]
    %v60 = vunpack.c.l.b16 %v28
    %v61 = vunpack.c.l.b16 %v29
    %v62 = vunpack.c.l.b16 %v30
    %v63 = vunpack.c.l.b16 %v31
    %v64 = vunpack.c.l.b16 %v32
    %v65 = vunpack.c.l.b16 %v33
    %v66 = vunpack.c.l.b16 %v34
    %v67 = vunpack.c.l.b16 %v35
    %v68 = vunpack.c.l.b16 %v36
    %v69 = vunpack.c.l.b16 %v37
    %v70 = vunpack.c.l.b16 %v38
    %v71 = vunpack.c.l.b16 %v39
    %v72 = vunpack.c.l.b16 %v40
    %v73 = vunpack.c.l.b16 %v41
    %v74 = vunpack.c.l.b16 %v42
    %v75 = vunpack.c.l.b16 %v43
    %v76 = vpack.c.b16 %v61, %v60
    %v77 = vpack.c.b16 %v63, %v62
    %v78 = vpack.c.b16 %v65, %v64
    %v79 = vpack.c.b16 %v67, %v66
    %v80 = vpack.c.b16 %v69, %v68
    %v81 = vpack.c.b16 %v71, %v70
    %v82 = vpack.c.b16 %v73, %v72
    %v83 = vpack.c.b16 %v75, %v74
    %vm84 = vcmask 261120
    %v86 = vsel %vm84, %v27, 0
    %v89 = vsel %vm84, %v76, 0
    %v92 = vsel %vm84, %v77, 0
    %v95 = vsel %vm84, %v78, 0
    %v98 = vsel %vm84, %v79, 0
    %v101 = vsel %vm84, %v80, 0
    %v104 = vsel %vm84, %v81, 0
    %v107 = vsel %vm84, %v82, 0
    %v110 = vsel %vm84, %v83, 0
    %112 = vmatprep.subr.bf16.mxu0 0
    %113 = vmatpush1.bf16.xpose.msra.mxu0 %v89
    %114 = vmatprep.subr.bf16.mxu0 0
    %115 = vmatpush1.bf16.xpose.msra.mxu0 %v92
    %116 = vmatprep.subr.bf16.mxu0 0
    %117 = vmatpush1.bf16.xpose.msra.mxu0 %v95
    %118 = vmatprep.subr.bf16.mxu0 0
    %119 = vmatpush1.bf16.xpose.msra.mxu0 %v98
    %120 = vmatprep.subr.bf16.mxu0 0
    %121 = vmatpush1.bf16.xpose.msra.mxu0 %v101
    %122 = vmatprep.subr.bf16.mxu0 0
    %123 = vmatpush1.bf16.xpose.msra.mxu0 %v104
    %124 = vmatprep.subr.bf16.mxu0 0
    %125 = vmatpush1.bf16.xpose.msra.mxu0 %v107
    %126 = vmatprep.subr.bf16.mxu0 0
    %127 = vmatpush1.bf16.xpose.msra.mxu0 %v110
    %128 = vmatprep.subr.bf16.mxu0 0
    %129 = vmatpush1.bf16.xpose.msra.mxu0 0
    %130 = vmatprep.subr.bf16.mxu0 0
    %131 = vmatpush1.bf16.xpose.msra.mxu0 0
    %132 = vmatprep.subr.bf16.mxu0 0
    %133 = vmatpush1.bf16.xpose.msra.mxu0 0
    %134 = vmatprep.subr.bf16.mxu0 0
    %135 = vmatpush1.bf16.xpose.msra.mxu0 0
    %136 = vmatprep.subr.bf16.mxu0 0
    %137 = vmatpush1.bf16.xpose.msra.mxu0 0
    %138 = vmatprep.subr.bf16.mxu0 0
    %139 = vmatpush1.bf16.xpose.msra.mxu0 0
    %140 = vmatprep.subr.bf16.mxu0 0
    %141 = vmatpush1.bf16.xpose.msra.mxu0 0
    %142 = vmatprep.subr.bf16.mxu0 0
    %143 = vmatpush1.bf16.xpose.msra.mxu0 0
    %144 = vmatprep.mubr.bf16.mxu0 0
    %145 = vmatmul.mubr.bf16.gmra.mrb[0].mxu0 %v86
    %v146 = vpop.f32.mrb[0].mxu0
    %v147 = vadd.f32 0.0, %v146
    %v148 = vpop.f32.mrb[0].mxu0
    %v149 = vpop.f32.mrb[0].mxu0
    %v150 = vpop.f32.mrb[0].mxu0
    %151 = vdwg.mxu0
    %v152 = vadd.f32 %v26, %v147
    %153 = vst [vmem:[#allocation2] sm:$0xff] %v152
    // Predicated region
    $region22: #{tpu_custom_call.1} parent=1 // pred_check
      %p154 = pneg %p21
    $region23: #{tpu_custom_call.1} parent=1 // pred_check_branch
      %156 = sbr.rel (%p154) target = $region25
    $region24: #{tpu_custom_call.1} parent=1 // pred_region
      %v157 = vld [vmem:[#allocation2] sm:$0xff]
      %v158 = vlaneseq
      %v159 = vshrl.u32 %v158, 7
      %v160 = vsub.s32 0, %v159
      %v161 = vrot.slane %v157, %v160
      %v162 = vsub.f32 %v157, %v161
      %v163 = vrot.slane %v162, 4
      %v164 = vadd.f32 %v162, %v163
      %v165 = vrot.slane %v164, 2
      %v166 = vadd.f32 %v164, %v165
      %v167 = vrot.slane %v166, 1
      %v168 = vadd.f32 %v166, %v167
      %v169 = vmul.f32 %v162, %v162
      %v170 = vrot.slane %v169, 4
      %v171 = vadd.f32 %v169, %v170
      %v172 = vrot.slane %v171, 2
      %v173 = vadd.f32 %v171, %v172
      %v174 = vrot.slane %v173, 1
      %v175 = vadd.f32 %v173, %v174
      %v176 = vrcp.pop 8.0
      %v177 = vmul.f32 %v168, %v176
      %v178 = vmul.f32 %v175, %v176
      %v179 = vmul.f32 %v177, %v177
      %v180 = vsub.f32 %v178, %v179
      %v181 = vmax.f32 %v180, 0.0
      %v182 = vadd.f32 %v181, 1e-05
      %v183 = vrsqrt.pop %v182
      %v184 = vsub.f32 %v162, %v177
      %v185 = vmul.f32 %v184, %v183
      %v186 = vld [vmem:[%s3] sm:$0x1]
      %v188 = vlaneseq
      %v189 = vshrl.u32 %v188, 7
      %v190 = vsub.s32 0, %v189
      %v191 = vrot.slane %v186, %v190
      %v193 = vmul.f32 %v185, %v191
      %v194 = vld [vmem:[%s4] sm:$0x1]
      %v196 = vlaneseq
      %v197 = vshrl.u32 %v196, 7
      %v198 = vsub.s32 0, %v197
      %v199 = vrot.slane %v194, %v198
      %v201 = vadd.f32 %v193, %v199
      %v202 = vmax.f32 %v201, 0.0
      %s203 = sld [smem:[#allocation4]]
      %s204 = sadd.s32 %s203, 0
      %v205 = vlaneseq
      %v206 = vstv %s204
      %v207 = vxor.u32 %v206, %v206
      %v208 = vxor.u32 %v207, 466688986
      %v209 = vadd.s32 %v205, %v206
      %v210 = vadd.s32 %v209, %v209
      %v211 = vshll.u32 %v209, 13
      %v212 = vshrl.u32 %v209, 19
      %v213 = vor.u32 %v211, %v212
      %v214 = vxor.u32 %v210, %v213
      %v215 = vadd.s32 %v210, %v214
      %v216 = vshll.u32 %v214, 15
      %v217 = vshrl.u32 %v214, 17
      %v218 = vor.u32 %v216, %v217
      %v219 = vxor.u32 %v215, %v218
      %v220 = vadd.s32 %v215, %v219
      %v221 = vshll.u32 %v219, 26
      %v222 = vshrl.u32 %v219, 6
      %v223 = vor.u32 %v221, %v222
      %v224 = vxor.u32 %v220, %v223
      %v225 = vadd.s32 %v220, %v224
      %v226 = vshll.u32 %v224, 6
      %v227 = vshrl.u32 %v224, 26
      %v228 = vor.u32 %v226, %v227
      %v229 = vxor.u32 %v225, %v228
      %v230 = vadd.s32 %v225, %v206
      %v231 = vadd.s32 %v229, %v208
      %v232 = vadd.s32 %v231, 1
      %v233 = vadd.s32 %v230, %v232
      %v234 = vshll.u32 %v232, 17
      %v235 = vshrl.u32 %v232, 15
      %v236 = vor.u32 %v234, %v235
      %v237 = vxor.u32 %v233, %v236
      %v238 = vadd.s32 %v233, %v237
      %v239 = vshll.u32 %v237, 29
      %v240 = vshrl.u32 %v237, 3
      %v241 = vor.u32 %v239, %v240
      %v242 = vxor.u32 %v238, %v241
      %v243 = vadd.s32 %v238, %v242
      %v244 = vshll.u32 %v242, 16
      %v245 = vshrl.u32 %v242, 16
      %v246 = vor.u32 %v244, %v245
      %v247 = vxor.u32 %v243, %v246
      %v248 = vadd.s32 %v243, %v247
      %v249 = vshll.u32 %v247, 24
      %v250 = vshrl.u32 %v247, 8
      %v251 = vor.u32 %v249, %v250
      %v252 = vxor.u32 %v248, %v251
      %v253 = vadd.s32 %v248, %v208
      %v254 = vadd.s32 %v252, %v206
      %v255 = vadd.s32 %v254, 2
      %v256 = vadd.s32 %v253, %v255
      %v257 = vshll.u32 %v255, 13
      %v258 = vshrl.u32 %v255, 19
      %v259 = vor.u32 %v257, %v258
      %v260 = vxor.u32 %v256, %v259
      %v261 = vadd.s32 %v256, %v260
      %v262 = vshll.u32 %v260, 15
      %v263 = vshrl.u32 %v260, 17
      %v264 = vor.u32 %v262, %v263
      %v265 = vxor.u32 %v261, %v264
      %v266 = vadd.s32 %v261, %v265
      %v267 = vshll.u32 %v265, 26
      %v268 = vshrl.u32 %v265, 6
      %v269 = vor.u32 %v267, %v268
      %v270 = vxor.u32 %v266, %v269
      %v271 = vadd.s32 %v266, %v270
      %v272 = vshll.u32 %v270, 6
      %v273 = vshrl.u32 %v270, 26
      %v274 = vor.u32 %v272, %v273
      %v275 = vxor.u32 %v271, %v274
      %v276 = vadd.s32 %v271, %v206
      %v277 = vadd.s32 %v275, %v206
      %v278 = vadd.s32 %v277, 3
      %v279 = vadd.s32 %v276, %v278
      %v280 = vshll.u32 %v278, 17
      %v281 = vshrl.u32 %v278, 15
      %v282 = vor.u32 %v280, %v281
      %v283 = vxor.u32 %v279, %v282
      %v284 = vadd.s32 %v279, %v283
      %v285 = vshll.u32 %v283, 29
      %v286 = vshrl.u32 %v283, 3
      %v287 = vor.u32 %v285, %v286
      %v288 = vxor.u32 %v284, %v287
      %v289 = vadd.s32 %v284, %v288
      %v290 = vshll.u32 %v288, 16
      %v291 = vshrl.u32 %v288, 16
      %v292 = vor.u32 %v290, %v291
      %v293 = vxor.u32 %v289, %v292
      %v294 = vadd.s32 %v289, %v293
      %v295 = vshll.u32 %v293, 24
      %v296 = vshrl.u32 %v293, 8
      %v297 = vor.u32 %v295, %v296
      %v298 = vxor.u32 %v294, %v297
      %v299 = vadd.s32 %v294, %v206
      %v300 = vadd.s32 %v298, %v208
      %v301 = vadd.s32 %v300, 4
      %v302 = vadd.s32 %v299, %v301
      %v303 = vshll.u32 %v301, 13
      %v304 = vshrl.u32 %v301, 19
      %v305 = vor.u32 %v303, %v304
      %v306 = vxor.u32 %v302, %v305
      %v307 = vadd.s32 %v302, %v306
      %v308 = vshll.u32 %v306, 15
      %v309 = vshrl.u32 %v306, 17
      %v310 = vor.u32 %v308, %v309
      %v311 = vxor.u32 %v307, %v310
      %v312 = vadd.s32 %v307, %v311
      %v313 = vshll.u32 %v311, 26
      %v314 = vshrl.u32 %v311, 6
      %v315 = vor.u32 %v313, %v314
      %v316 = vxor.u32 %v312, %v315
      %v317 = vadd.s32 %v312, %v316
      %v318 = vshll.u32 %v316, 6
      %v319 = vshrl.u32 %v316, 26
      %v320 = vor.u32 %v318, %v319
      %v321 = vxor.u32 %v317, %v320
      %v322 = vadd.s32 %v317, %v208
      %v323 = vadd.s32 %v321, %v206
      %v324 = vadd.s32 %v323, 5
      %v325 = vxor.u32 %v322, %v324
      %326 = set.rngseed %v325
      %v327 = vrng
      %v328 = vand.u32 %v327, 8388607
      %vm329 = vcmp.ge.s32.totalorder %v328, 1677721
      %v330 = vsel %vm329, %v202, 0.0
      %331 = vst [vmem:[#allocation5] sm:$0xff] %v330
    $region25: #{tpu_custom_call.1} parent=1 // pred_fallthru
      _
    // Predicated region
    $region26: #{tpu_custom_call.1} parent=1 // pred_check
      _
    $region27: #{tpu_custom_call.1} parent=1 // pred_check_branch
      %333 = sbr.rel (0) target = $region29
    $region28: #{tpu_custom_call.1} parent=1 // pred_region
      %s335 = ssub.s32 128, 128
      %336 = vsyncadd [#allocation6], %s335
      %s338 = sshll.u32 [#allocation5], 4
      %s339 = int_to_ptr.vmem [resolvable:$true] %s338
      %341 = dma.vmem_to_hbm [thread:$0]  %s339, 128, %s5, [#allocation6]
    $region29: #{tpu_custom_call.1} parent=1 // pred_fallthru
      _
    // Predicated region
    $region30: #{tpu_custom_call.1} parent=1 // pred_check
      _
    $region31: #{tpu_custom_call.1} parent=1 // pred_check_branch
      %343 = sbr.rel (0) target = $region33
    $region32: #{tpu_custom_call.1} parent=1 // pred_region
      %344 = dma.done [#allocation6], 128
    $region33: #{tpu_custom_call.1} parent=1 // pred_fallthru
      _
    %345 = vsyncpa [#allocation6], 1

// kernel: tpu_custom_call.1
$region0: #{tpu_custom_call.1}
  #allocation0 [shape = 'u32[]', space=smem, size = 0x4, offset = 0x4, fixed_abs, tag = 'smem constant byte address 0x4 - core index']
  #allocation1 [shape = 'u32[144,128]{1,0:T(1,128)}', space=vmem, size = 0x12000, scoped, tag = 'internal scratch']
  #allocation2 [shape = 'f32[8,128]{1,0:T(8,128)}', space=vmem, size = 0x1000, scoped, tag = 'scratch operand']
  #allocation3 [shape = 's32[1]{0}', space=sflag, size = 0x4, scoped, tag = 'scoped memory for tpu_custom_call.1']
  #allocation4 [shape = 's32[1]{0:T(128)S(6)}', space=smem, size = 0x200, scoped, tag = 'prefetched SMEM operand 0']
  %s0 = inlined_call_operand.<no memory space> [shape: s32[1], index: 0, kind: input, shape index: {}]
  %s1 = inlined_call_operand.vmem [shape: bf16[8,32], index: 1, kind: input, shape index: {}]
  %s2 = inlined_call_operand.vmem [shape: bf16[128,32], index: 2, kind: input, shape index: {}]
  %s3 = inlined_call_operand.vmem [shape: f32[1,128], index: 3, kind: input, shape index: {}]
  %s4 = inlined_call_operand.vmem [shape: f32[1,128], index: 4, kind: input, shape index: {}]
  %s5 = inlined_call_operand.hbm [shape: f32[8,128], index: 5, kind: output, shape index: {}]
  %s6 = sld [smem:[#allocation0]]
  $region34: #{tpu_custom_call.1} parent=0
    _
  %s8 = ssub.s32 1, %s6
  %s9 = scalar_select 0, %s8, %s6
  %10 = sst [smem:[#allocation4]] %s0
  $region1: #{tpu_custom_call.1} parent=0
    #allocation5 [shape = 'u8[4096]{0}', space=vmem, size = 0x1000, scoped, tag = 'output window, operand 0, single buffered']
    #allocation6 [shape = 's32[1]{0}', space=sflag, size = 0x4, scoped, tag = 'scoped memory for tpu_custom_call.1']
    %11 = vsyncpa [#allocation6], 0
    // Predicated region
    $region2: #{tpu_custom_call.1} parent=1 // pred_check
      _
    $region3: #{tpu_custom_call.1} parent=1 // pred_check_branch
      %13 = sbr.rel (0) target = $region5
    $region4: #{tpu_custom_call.1} parent=1 // pred_region
      _
    $region5: #{tpu_custom_call.1} parent=1 // pred_fallthru
      _
    // Predicated region
    $region6: #{tpu_custom_call.1} parent=1 // pred_check
      _
    $region7: #{tpu_custom_call.1} parent=1 // pred_check_branch
      %15 = sbr.rel (0) target = $region9
    $region8: #{tpu_custom_call.1} parent=1 // pred_region
      _
    $region9: #{tpu_custom_call.1} parent=1 // pred_fallthru
      _
    // Predicated region
    $region10: #{tpu_custom_call.1} parent=1 // pred_check
      _
    $region11: #{tpu_custom_call.1} parent=1 // pred_check_branch
      %17 = sbr.rel (0) target = $region13
    $region12: #{tpu_custom_call.1} parent=1 // pred_region
      _
    $region13: #{tpu_custom_call.1} parent=1 // pred_fallthru
      _
    // Predicated region
    $region14: #{tpu_custom_call.1} parent=1 // pred_check
      _
    $region15: #{tpu_custom_call.1} parent=1 // pred_check_branch
      %19 = sbr.rel (0) target = $region17
    $region16: #{tpu_custom_call.1} parent=1 // pred_region
      _
    $region17: #{tpu_custom_call.1} parent=1 // pred_fallthru
      _
    %p21 = scmp.eq.s32.totalorder 0, 0
    // Predicated region
    $region18: #{tpu_custom_call.1} parent=1 // pred_check
      %p22 = pneg %p21
    $region19: #{tpu_custom_call.1} parent=1 // pred_check_branch
      %24 = sbr.rel (%p22) target = $region21
    $region20: #{tpu_custom_call.1} parent=1 // pred_region
      %25 = vst [vmem:[#allocation2] sm:$0xff] 0.0
    $region21: #{tpu_custom_call.1} parent=1 // pred_fallthru
      _
    %v26 = vld [vmem:[#allocation2] sm:$0xff]
    %v27 = vld [vmem:[%s1] sm:$0xf]
    %v28 = vld [vmem:[%s2] sm:$0xf]
    %v29 = vld [vmem:[%s2 + $0x4] sm:$0xf]
    %v30 = vld [vmem:[%s2 + $0x8] sm:$0xf]
    %v31 = vld [vmem:[%s2 + $0xc] sm:$0xf]
    %v32 = vld [vmem:[%s2 + $0x10] sm:$0xf]
    %v33 = vld [vmem:[%s2 + $0x14] sm:$0xf]
    %v34 = vld [vmem:[%s2 + $0x18] sm:$0xf]
    %v35 = vld [vmem:[%s2 + $0x1c] sm:$0xf]
    %v36 = vld [vmem:[%s2 + $0x20] sm:$0xf]
    %v37 = vld [vmem:[%s2 + $0x24] sm:$0xf]
    %v38 = vld [vmem:[%s2 + $0x28] sm:$0xf]
    %v39 = vld [vmem:[%s2 + $0x2c] sm:$0xf]
    %v40 = vld [vmem:[%s2 + $0x30] sm:$0xf]
    %v41 = vld [vmem:[%s2 + $0x34] sm:$0xf]
    %v42 = vld [vmem:[%s2 + $0x38] sm:$0xf]
    %v43 = vld [vmem:[%s2 + $0x3c] sm:$0xf]
    %v60 = vunpack.c.l.b16 %v28
    %v61 = vunpack.c.l.b16 %v29
    %v62 = vunpack.c.l.b16 %v30
    %v63 = vunpack.c.l.b16 %v31
    %v64 = vunpack.c.l.b16 %v32
    %v65 = vunpack.c.l.b16 %v33
    %v66 = vunpack.c.l.b16 %v34
    %v67 = vunpack.c.l.b16 %v35
    %v68 = vunpack.c.l.b16 %v36
    %v69 = vunpack.c.l.b16 %v37
    %v70 = vunpack.c.l.b16 %v38
    %v71 = vunpack.c.l.b16 %v39
    %v72 = vunpack.c.l.b16 %v40
    %v73 = vunpack.c.l.b16 %v41
    %v74 = vunpack.c.l.b16 %v42
    %v75 = vunpack.c.l.b16 %v43
    %v76 = vpack.c.b16 %v61, %v60
    %v77 = vpack.c.b16 %v63, %v62
    %v78 = vpack.c.b16 %v65, %v64
    %v79 = vpack.c.b16 %v67, %v66
    %v80 = vpack.c.b16 %v69, %v68
    %v81 = vpack.c.b16 %v71, %v70
    %v82 = vpack.c.b16 %v73, %v72
    %v83 = vpack.c.b16 %v75, %v74
    %vm84 = vcmask 261120
    %v86 = vsel %vm84, %v27, 0
    %v89 = vsel %vm84, %v76, 0
    %v92 = vsel %vm84, %v77, 0
    %v95 = vsel %vm84, %v78, 0
    %v98 = vsel %vm84, %v79, 0
    %v101 = vsel %vm84, %v80, 0
    %v104 = vsel %vm84, %v81, 0
    %v107 = vsel %vm84, %v82, 0
    %v110 = vsel %vm84, %v83, 0
    %112 = vmatprep.subr.bf16.mxu0 0
    %113 = vmatpush1.bf16.xpose.msra.mxu0 %v89
    %114 = vmatprep.subr.bf16.mxu0 0
    %115 = vmatpush1.bf16.xpose.msra.mxu0 %v92
    %116 = vmatprep.subr.bf16.mxu0 0
    %117 = vmatpush1.bf16.xpose.msra.mxu0 %v95
    %118 = vmatprep.subr.bf16.mxu0 0
    %119 = vmatpush1.bf16.xpose.msra.mxu0 %v98
    %120 = vmatprep.subr.bf16.mxu0 0
    %121 = vmatpush1.bf16.xpose.msra.mxu0 %v101
    %122 = vmatprep.subr.bf16.mxu0 0
    %123 = vmatpush1.bf16.xpose.msra.mxu0 %v104
    %124 = vmatprep.subr.bf16.mxu0 0
    %125 = vmatpush1.bf16.xpose.msra.mxu0 %v107
    %126 = vmatprep.subr.bf16.mxu0 0
    %127 = vmatpush1.bf16.xpose.msra.mxu0 %v110
    %128 = vmatprep.subr.bf16.mxu0 0
    %129 = vmatpush1.bf16.xpose.msra.mxu0 0
    %130 = vmatprep.subr.bf16.mxu0 0
    %131 = vmatpush1.bf16.xpose.msra.mxu0 0
    %132 = vmatprep.subr.bf16.mxu0 0
    %133 = vmatpush1.bf16.xpose.msra.mxu0 0
    %134 = vmatprep.subr.bf16.mxu0 0
    %135 = vmatpush1.bf16.xpose.msra.mxu0 0
    %136 = vmatprep.subr.bf16.mxu0 0
    %137 = vmatpush1.bf16.xpose.msra.mxu0 0
    %138 = vmatprep.subr.bf16.mxu0 0
    %139 = vmatpush1.bf16.xpose.msra.mxu0 0
    %140 = vmatprep.subr.bf16.mxu0 0
    %141 = vmatpush1.bf16.xpose.msra.mxu0 0
    %142 = vmatprep.subr.bf16.mxu0 0
    %143 = vmatpush1.bf16.xpose.msra.mxu0 0
    %144 = vmatprep.mubr.bf16.mxu0 0
    %145 = vmatmul.mubr.bf16.gmra.mrb[0].mxu0 %v86
    %v146 = vpop.f32.mrb[0].mxu0
    %v147 = vadd.f32 0.0, %v146
    %v148 = vpop.f32.mrb[0].mxu0
    %v149 = vpop.f32.mrb[0].mxu0
    %v150 = vpop.f32.mrb[0].mxu0
    %151 = vdwg.mxu0
    %v152 = vadd.f32 %v26, %v147
    %153 = vst [vmem:[#allocation2] sm:$0xff] %v152
    // Predicated region
    $region22: #{tpu_custom_call.1} parent=1 // pred_check
      %p154 = pneg %p21
    $region23: #{tpu_custom_call.1} parent=1 // pred_check_branch
      %156 = sbr.rel (%p154) target = $region25
    $region24: #{tpu_custom_call.1} parent=1 // pred_region
      %v157 = vld [vmem:[#allocation2] sm:$0xff]
      %v158 = vlaneseq
      %v159 = vshrl.u32 %v158, 7
      %v160 = vsub.s32 0, %v159
      %v161 = vrot.slane %v157, %v160
      %v162 = vsub.f32 %v157, %v161
      %v163 = vrot.slane %v162, 4
      %v164 = vadd.f32 %v162, %v163
      %v165 = vrot.slane %v164, 2
      %v166 = vadd.f32 %v164, %v165
      %v167 = vrot.slane %v166, 1
      %v168 = vadd.f32 %v166, %v167
      %v169 = vmul.f32 %v162, %v162
      %v170 = vrot.slane %v169, 4
      %v171 = vadd.f32 %v169, %v170
      %v172 = vrot.slane %v171, 2
      %v173 = vadd.f32 %v171, %v172
      %v174 = vrot.slane %v173, 1
      %v175 = vadd.f32 %v173, %v174
      %v176 = vrcp.pop 8.0
      %v177 = vmul.f32 %v168, %v176
      %v178 = vmul.f32 %v175, %v176
      %v179 = vmul.f32 %v177, %v177
      %v180 = vsub.f32 %v178, %v179
      %v181 = vmax.f32 %v180, 0.0
      %v182 = vadd.f32 %v181, 1e-05
      %v183 = vrsqrt.pop %v182
      %v184 = vsub.f32 %v162, %v177
      %v185 = vmul.f32 %v184, %v183
      %v186 = vld [vmem:[%s3] sm:$0x1]
      %v188 = vlaneseq
      %v189 = vshrl.u32 %v188, 7
      %v190 = vsub.s32 0, %v189
      %v191 = vrot.slane %v186, %v190
      %v193 = vmul.f32 %v185, %v191
      %v194 = vld [vmem:[%s4] sm:$0x1]
      %v196 = vlaneseq
      %v197 = vshrl.u32 %v196, 7
      %v198 = vsub.s32 0, %v197
      %v199 = vrot.slane %v194, %v198
      %v201 = vadd.f32 %v193, %v199
      %v202 = vmax.f32 %v201, 0.0
      %v203 = vlaneseq
      %v204 = vshrl.u32 %v203, 7
      %v205 = vlaneseq
      %v206 = vand.u32 %v205, 127
      %s207 = smul.u32 0, 128
      %v208 = vstv %s207
      %v209 = vadd.s32 %v206, %v208
      %v210 = vmul.u32 %v204, 65599
      %s211 = sld [smem:[#allocation4]]
      %s212 = smul.u32 %s211, 40503
      %v213 = vstv %s212
      %v214 = vadd.s32 %v210, %v213
      %v215 = vmul.u32 %v214, 1103515245
      %v216 = vshra.s32 %v215, 13
      %v217 = vand.u32 %v216, 524287
      %v218 = vxor.u32 %v215, %v217
      %v219 = vmul.u32 %v209, 747796405
      %v220 = vadd.s32 %v218, %v219
      %v221 = vshra.s32 %v220, 15
      %v222 = vand.u32 %v221, 131071
      %v223 = vxor.u32 %v220, %v222
      %v224 = vmul.u32 %v223, 1103515245
      %v225 = vshra.s32 %v224, 16
      %v226 = vand.u32 %v225, 65535
      %v227 = vxor.u32 %v224, %v226
      %v228 = vand.u32 %v227, 8388607
      %vm229 = vcmp.ge.s32.totalorder %v228, 1677721
      %v230 = vsel %vm229, %v202, 0.0
      %231 = vst [vmem:[#allocation5] sm:$0xff] %v230
    $region25: #{tpu_custom_call.1} parent=1 // pred_fallthru
      _
    // Predicated region
    $region26: #{tpu_custom_call.1} parent=1 // pred_check
      _
    $region27: #{tpu_custom_call.1} parent=1 // pred_check_branch
      %233 = sbr.rel (0) target = $region29
    $region28: #{tpu_custom_call.1} parent=1 // pred_region
      %s235 = ssub.s32 128, 128
      %236 = vsyncadd [#allocation6], %s235
      %s238 = sshll.u32 [#allocation5], 4
      %s239 = int_to_ptr.vmem [resolvable:$true] %s238
      %241 = dma.vmem_to_hbm [thread:$0]  %s239, 128, %s5, [#allocation6]
    $region29: #{tpu_custom_call.1} parent=1 // pred_fallthru
      _
    // Predicated region
    $region30: #{tpu_custom_call.1} parent=1 // pred_check
      _
    $region31: #{tpu_custom_call.1} parent=1 // pred_check_branch
      %243 = sbr.rel (0) target = $region33
    $region32: #{tpu_custom_call.1} parent=1 // pred_region
      %244 = dma.done [#allocation6], 128
    $region33: #{tpu_custom_call.1} parent=1 // pred_fallthru
      _
    %245 = vsyncpa [#allocation6], 1

</llo_original>
